<compile_context>
chip_gen: v6e
topology: v6e:2x2x1
jax: 0.10.0
libtpu: 0.0.40
codegen_flags: <defaults>
</compile_context>

<pallas_src>
import jax
import jax.numpy as jnp
from jax.experimental import pallas as pl
from jax.experimental.pallas import tpu as pltpu


def _add_kernel(a_ref, b_ref, o_ref):
    # Elementwise bf16 add on the VPU; whole tile at once.
    o_ref[...] = a_ref[...] + b_ref[...]


def _round_up(x: int, m: int) -> int:
    return ((x + m - 1) // m) * m


def _physical_vmem_bytes() -> int:
    """Per-TensorCore VMEM capacity; conservative (v7x) fallback if unknown."""
    try:
        cap = int(pltpu.get_tpu_info().vmem_capacity_bytes)
        if cap <= 0:
            raise ValueError("bad vmem capacity")
        return cap
    except Exception:
        return 64 * 1024 * 1024  # v7x per-TC VMEM; safe everywhere


_LANE_CANDIDATES = (8192, 4096, 2048, 1024, 512, 256, 128)


def _choose_lane_width(total: int):
    """Largest lane width (multiple of 128) dividing `total`; prefer >= 8 rows."""
    best = None
    for c in _LANE_CANDIDATES:
        if total % c == 0:
            if total // c >= 8:
                return c
            if best is None:
                best = c
    return best  # may be None -> ragged total, caller falls back


def _pick_block(M, N, max_block_elems, max_tn):
    """Choose a lane-dense, VMEM-bounded (bm, bn) block."""
    # Lane (last) dim: full N if it fits the cap (full-extent blocks are always
    # legal); otherwise a large multiple of 128 -> wide, unmasked vst.
    bn = N if N <= max_tn else max_tn

    rows_budget = max(1, max_block_elems // max(bn, 1))
    if M <= rows_budget:
        bm = M
        # Megacore (v7x has 2 TensorCores): if the whole array would be a single
        # grid block and it is big enough to care, split the row axis in two so
        # both cores get work. Extra grid step is noise on 1-TC chips.
        single_block = (N <= bn)
        if single_block and M >= 32 and (M * N * 2) >= (2 << 20):
            bm = min(M, _round_up(pl.cdiv(M, 2), 16))
    else:
        # Multiple of 16 rows (bf16 sublane packing); bounded by the VMEM budget.
        bm = max(16, (rows_budget // 16) * 16)
    return bm, bn


def _custom_add_2d(a, b, *, max_block_elems, max_tn, in_place):
    M, N = a.shape

    vmem_cap = _physical_vmem_bytes()
    if max_block_elems is None:
        # 3 arrays x 2 pipeline buffers per live tile, ~25% VMEM headroom,
        # bf16 = 2 bytes/elem.  v7x(64 MiB) -> ~4M elems (8 MiB tile);
        # v5e/v6e(128 MiB) -> ~8M elems (16 MiB tile).
        max_block_elems = max(16 * 128, ((vmem_cap * 3 // 4) // 6) // 2)

    bm, bn = _pick_block(M, N, max_block_elems, max_tn)
    grid = (pl.cdiv(M, bm), pl.cdiv(N, bn))

    # 2 reads + 1 write of bf16 (2 bytes/elem).  Aliasing the output does not
    # change this.
    cost = pl.CostEstimate(
        flops=M * N, transcendentals=0, bytes_accessed=3 * M * N * 2
    )

    return pl.pallas_call(
        _add_kernel,
        out_shape=jax.ShapeDtypeStruct((M, N), jnp.bfloat16),
        grid_spec=pltpu.PrefetchScalarGridSpec(
            num_scalar_prefetch=0,
            grid=grid,
            in_specs=[
                pl.BlockSpec((bm, bn), lambda i, j: (i, j)),
                pl.BlockSpec((bm, bn), lambda i, j: (i, j)),
            ],
            out_specs=pl.BlockSpec((bm, bn), lambda i, j: (i, j)),
        ),
        compiler_params=pltpu.CompilerParams(
            dimension_semantics=("parallel", "parallel"),
            vmem_limit_bytes=vmem_cap * 7 // 8,
        ),
        cost_estimate=cost,
        input_output_aliases=({0: 0} if in_place else {}),
    )(a, b)


def custom_add_bf16(
    a: jax.Array,
    b: jax.Array,
    *,
    max_block_elems: int | None = None,  # None -> auto from physical VMEM
    max_tn: int = 8192,                  # lane-dim cap, multiple of 128
    in_place: bool = False,              # alias out onto `a` (footprint only; see header)
) -> jax.Array:
    """Pallas equivalent of torch.ops.custom_op.custom_add_bf16 (bf16 only)."""
    assert a.shape == b.shape, "custom_add_bf16 requires matching shapes"
    assert a.dtype == jnp.bfloat16 and b.dtype == jnp.bfloat16, "bf16 only"

    orig_shape = a.shape
    if a.ndim == 0:
        a = a.reshape(1)
        b = b.reshape(1)

    total = a.size
    last = a.shape[-1]

    if a.ndim >= 2 and last % 128 == 0:
        # Already lane-dense; just collapse leading dims.
        a2 = a.reshape(-1, last)
        b2 = b.reshape(-1, last)
    else:
        c = _choose_lane_width(total)
        if c is not None:
            # Flatten to a lane-dense (rows, C) view; pure reshape, no padding.
            a2 = a.reshape(total // c, c)
            b2 = b.reshape(total // c, c)
        else:
            # Ragged total (not a multiple of 128): keep the original last dim;
            # Pallas masks the partial blocks.
            a2 = a.reshape(1, -1) if a.ndim == 1 else a.reshape(-1, last)
            b2 = b.reshape(1, -1) if b.ndim == 1 else b.reshape(-1, last)

    out2 = _custom_add_2d(
        a2, b2, max_block_elems=max_block_elems, max_tn=max_tn, in_place=in_place
    )
    return out2.reshape(orig_shape)


if __name__ == "__main__":
    key = jax.random.PRNGKey(0)
    ka, kb, kc, kd, ke, kf = jax.random.split(key, 6)

    def _ref(x, y):
        return (x.astype(jnp.float32) + y.astype(jnp.float32)).astype(jnp.bfloat16)

    def _check(out, x, y):
        r = _ref(x, y)
        assert out.dtype == jnp.bfloat16 and out.shape == x.shape
        assert jnp.allclose(out.astype(jnp.float32), r.astype(jnp.float32),
                            atol=1e-2, rtol=1e-2)

    # 1) Lane-dense shape (last dim multiple of 128): collapse path.
    shape = (16, 256)
    a = jax.random.normal(ka, shape, dtype=jnp.float32).astype(jnp.bfloat16)
    b = jax.random.normal(kb, shape, dtype=jnp.float32).astype(jnp.bfloat16)
    out = custom_add_bf16(a, b)
    jax.block_until_ready(out)
    _check(out, a, b)

    # 2) Narrow last dim (8): exercises the flatten-to-lane-dense path.
    shape_narrow = (256, 8)
    an = jax.random.normal(kc, shape_narrow, dtype=jnp.float32).astype(jnp.bfloat16)
    bn = jax.random.normal(kd, shape_narrow, dtype=jnp.float32).astype(jnp.bfloat16)
    outn = custom_add_bf16(an, bn)
    jax.block_until_ready(outn)
    _check(outn, an, bn)

    # 3) Ragged total (40*200 not a multiple of 128) with a tiny tile budget:
    #    exercises the masked partial-block fallback and the multi-block grid.
    shape_ragged = (40, 200)
    ar = jax.random.normal(ke, shape_ragged, dtype=jnp.float32).astype(jnp.bfloat16)
    br = jax.random.normal(kf, shape_ragged, dtype=jnp.float32).astype(jnp.bfloat16)
    outr = custom_add_bf16(ar, br, max_block_elems=16 * 128, max_tn=128)
    jax.block_until_ready(outr)
    _check(outr, ar, br)

    print("KERNEL_OK")
</pallas_src>

<mosaic_0001>
module attributes {stable_mosaic.version = 11 : i64} {
  func.func @_add_kernel(%arg0: i32, %arg1: i32, %arg2: memref<16x256xbf16, #tpu.memory_space<vmem>>, %arg3: memref<16x256xbf16, #tpu.memory_space<vmem>>, %arg4: memref<16x256xbf16, #tpu.memory_space<vmem>>) attributes {dimension_semantics = [#tpu.dimension_semantics<parallel>, #tpu.dimension_semantics<parallel>], iteration_bounds = array<i64: 1, 1>, scalar_prefetch = 0 : i64, scratch_operands = 0 : i64, tpu.core_type = #tpu.core_type<tc>, window_params = [{transform_indices = @transform_0, window_bounds = array<i64: 16, 256>}, {transform_indices = @transform_1, window_bounds = array<i64: 16, 256>}, {transform_indices = @transform_2, window_bounds = array<i64: 16, 256>}]} {
    %c0 = arith.constant 0 : index
    %c0_0 = arith.constant 0 : index
    %0 = vector.load %arg2[%c0, %c0_0] : memref<16x256xbf16, #tpu.memory_space<vmem>>, vector<16x256xbf16>
    %c0_1 = arith.constant 0 : index
    %c0_2 = arith.constant 0 : index
    %1 = vector.load %arg3[%c0_1, %c0_2] : memref<16x256xbf16, #tpu.memory_space<vmem>>, vector<16x256xbf16>
    %2 = arith.addf %0, %1 : vector<16x256xbf16>
    %c0_3 = arith.constant 0 : index
    %c0_4 = arith.constant 0 : index
    %3 = vector.load %arg4[%c0_3, %c0_4] : memref<16x256xbf16, #tpu.memory_space<vmem>>, vector<16x256xbf16>
    tpu.vector_store %arg4[%c0_3, %c0_4], %2 {strides = array<i32>} : memref<16x256xbf16, #tpu.memory_space<vmem>>, vector<16x256xbf16>,
    return
  }
  func.func @transform_0(%arg0: i32, %arg1: i32) -> (i32, i32) {
    %c0_i32 = arith.constant 0 : i32
    return %arg0, %arg1 : i32, i32
  }
  func.func @transform_1(%arg0: i32, %arg1: i32) -> (i32, i32) {
    %c0_i32 = arith.constant 0 : i32
    return %arg0, %arg1 : i32, i32
  }
  func.func @transform_2(%arg0: i32, %arg1: i32) -> (i32, i32) {
    %c0_i32 = arith.constant 0 : i32
    return %arg0, %arg1 : i32, i32
  }
}

</mosaic_0001>

<llo_original>
// kernel: tpu_custom_call.1
$region0: #{tpu_custom_call.1}
  #allocation0 [shape = 'u32[]', space=smem, size = 0x4, offset = 0x4, fixed_abs, tag = 'smem constant byte address 0x4 - core index']
  #allocation1 [shape = 'u32[144,128]{1,0:T(1,128)}', space=vmem, size = 0x12000, scoped, tag = 'internal scratch']
  %s0 = inlined_call_operand.hbm [shape: bf16[16,256], index: 0, kind: input, shape index: {}]
  %s1 = inlined_call_operand.hbm [shape: bf16[16,256], index: 1, kind: input, shape index: {}]
  %s2 = inlined_call_operand.hbm [shape: bf16[16,256], index: 2, kind: output, shape index: {}]
  %s3 = sld [smem:[#allocation0]]
  $region26: #{tpu_custom_call.1} parent=0
    _
  %s5 = ssub.s32 1, %s3
  %s6 = scalar_select 0, %s5, %s3
  $region1: #{tpu_custom_call.1} parent=0
    #allocation2 [shape = 'u8[8192]{0}', space=vmem, size = 0x2000, scoped, tag = 'input window, operand 0, single buffered']
    #allocation3 [shape = 's32[1]{0}', space=sflag, size = 0x4, scoped, tag = 'scoped memory for tpu_custom_call.1']
    #allocation4 [shape = 's32[1]{0}', space=sflag, size = 0x4, scoped, tag = 'scoped memory for tpu_custom_call.1']
    #allocation5 [shape = 'u8[8192]{0}', space=vmem, size = 0x2000, scoped, tag = 'input window, operand 1, single buffered']
    #allocation6 [shape = 's32[1]{0}', space=sflag, size = 0x4, scoped, tag = 'scoped memory for tpu_custom_call.1']
    #allocation7 [shape = 'u8[8192]{0}', space=vmem, size = 0x2000, scoped, tag = 'output window, operand 0, single buffered']
    %7 = vsyncpa [#allocation3], 0
    %8 = vsyncpa [#allocation6], 0
    %9 = vsyncpa [#allocation4], 0
    // Predicated region
    $region2: #{tpu_custom_call.1} parent=1 // pred_check
      _
    $region3: #{tpu_custom_call.1} parent=1 // pred_check_branch
      %11 = sbr.rel (0) target = $region5
    $region4: #{tpu_custom_call.1} parent=1 // pred_region
      %s13 = ssub.s32 256, 256
      %14 = vsyncadd [#allocation3], %s13
      %s15 = sshll.u32 [#allocation2], 4
      %s16 = int_to_ptr.vmem [resolvable:$true] %s15
      %21 = dma.hbm_to_vmem [thread:$0]  %s0, 256, %s16, [#allocation3], 128, 128, 8
    $region5: #{tpu_custom_call.1} parent=1 // pred_fallthru
      _
    // Predicated region
    $region6: #{tpu_custom_call.1} parent=1 // pred_check
      _
    $region7: #{tpu_custom_call.1} parent=1 // pred_check_branch
      %23 = sbr.rel (0) target = $region9
    $region8: #{tpu_custom_call.1} parent=1 // pred_region
      %s25 = ssub.s32 256, 256
      %26 = vsyncadd [#allocation6], %s25
      %s27 = sshll.u32 [#allocation5], 4
      %s28 = int_to_ptr.vmem [resolvable:$true] %s27
      %33 = dma.hbm_to_vmem [thread:$0]  %s1, 256, %s28, [#allocation6], 128, 128, 8
    $region9: #{tpu_custom_call.1} parent=1 // pred_fallthru
      _
    // Predicated region
    $region10: #{tpu_custom_call.1} parent=1 // pred_check
      _
    $region11: #{tpu_custom_call.1} parent=1 // pred_check_branch
      %35 = sbr.rel (0) target = $region13
    $region12: #{tpu_custom_call.1} parent=1 // pred_region
      %36 = dma.done [#allocation3], 256
    $region13: #{tpu_custom_call.1} parent=1 // pred_fallthru
      _
    // Predicated region
    $region14: #{tpu_custom_call.1} parent=1 // pred_check
      _
    $region15: #{tpu_custom_call.1} parent=1 // pred_check_branch
      %38 = sbr.rel (0) target = $region17
    $region16: #{tpu_custom_call.1} parent=1 // pred_region
      %39 = dma.done [#allocation6], 256
    $region17: #{tpu_custom_call.1} parent=1 // pred_fallthru
      _
    %v40 = vld [vmem:[#allocation2] sm:$0xff]
    %v41 = vld [vmem:[#allocation2 + $0x8] sm:$0xff]
    %v42 = vld [vmem:[#allocation5] sm:$0xff]
    %v43 = vld [vmem:[#allocation5 + $0x8] sm:$0xff]
    %v44 = vadd.bf16 %v40, %v42
    %v45 = vadd.bf16 %v41, %v43
    %46 = vst [vmem:[#allocation7] sm:$0xff] %v44
    %47 = vst [vmem:[#allocation7 + $0x8] sm:$0xff] %v45
    // Predicated region
    $region18: #{tpu_custom_call.1} parent=1 // pred_check
      _
    $region19: #{tpu_custom_call.1} parent=1 // pred_check_branch
      %49 = sbr.rel (0) target = $region21
    $region20: #{tpu_custom_call.1} parent=1 // pred_region
      %s51 = ssub.s32 256, 256
      %52 = vsyncadd [#allocation4], %s51
      %s53 = sshll.u32 [#allocation7], 4
      %s54 = int_to_ptr.vmem [resolvable:$true] %s53
      %59 = dma.vmem_to_hbm [thread:$0]  %s54, 256, %s2, [#allocation4], 128, 128, 8
    $region21: #{tpu_custom_call.1} parent=1 // pred_fallthru
      _
    // Predicated region
    $region22: #{tpu_custom_call.1} parent=1 // pred_check
      _
    $region23: #{tpu_custom_call.1} parent=1 // pred_check_branch
      %61 = sbr.rel (0) target = $region25
    $region24: #{tpu_custom_call.1} parent=1 // pred_region
      %62 = dma.done [#allocation4], 256
    $region25: #{tpu_custom_call.1} parent=1 // pred_fallthru
      _
    %63 = vsyncpa [#allocation3], 1
    %64 = vsyncpa [#allocation6], 1
    %65 = vsyncpa [#allocation4], 1

</llo_original>
